<compile_context>
chip_gen: v6e
topology: v6e:2x2x1
jax: 0.10.0
libtpu: 0.0.40
codegen_flags: <defaults>
</compile_context>

<pallas_src>
import functools

import numpy as np

import jax
import jax.numpy as jnp
from jax import lax
from jax.experimental import pallas as pl
from jax.experimental.pallas import tpu as pltpu

EPS = 1e-5  # nn.LayerNorm default eps


def _pick_nb(n, hw, cap=512):
    """Largest divisor of n with nb*hw <= cap (lane/M dim of one grid step)."""
    nb = 1
    for cand in range(1, n + 1):
        if n % cand == 0 and cand * hw <= cap:
            nb = cand
    return nb


def _build_masks(h, w, nb):
    """Host-side constants.

    tap  : (9, 1, M) 0/1 masks -- tap k is valid at output pixel m iff the
           spatial offset (k//3-1, k%3-1) stays inside the image (gives the
           exact zero padding of the 3x3 'same' conv).
    smask: (NB, 1, M) one-hot-per-sample masks for the per-sample LayerNorm
           reductions.
    """
    hw = h * w
    m_tot = nb * hw
    tap = np.zeros((9, 1, m_tot), np.float32)
    for k in range(9):
        oy, ox = k // 3 - 1, k % 3 - 1
        for m in range(m_tot):
            p = m % hw
            hh, ww = p // w + oy, p % w + ox
            if 0 <= hh < h and 0 <= ww < w:
                tap[k, 0, m] = 1.0
    smask = np.zeros((nb, 1, m_tot), np.float32)
    for b in range(nb):
        smask[b, 0, b * hw:(b + 1) * hw] = 1.0
    return jnp.asarray(tap), jnp.asarray(smask)


@functools.lru_cache(maxsize=None)
def _roll_sign():
    """One-time probe of pltpu.roll's rotation convention (run outside jit).

    Returns s such that pltpu.roll(x, (s*off) % n, axis)[..., m] == x[..., m+off]
    for in-range positions.  jnp.roll semantics -> s = -1.
    """
    def probe(x_ref, o_ref):
        o_ref[...] = pltpu.roll(x_ref[...], 1, axis=1)

    x = jnp.tile(jnp.arange(128, dtype=jnp.float32), (8, 1))
    y = pl.pallas_call(
        probe, out_shape=jax.ShapeDtypeStruct((8, 128), jnp.float32))(x)
    return -1 if float(y[0, 0]) > 64.0 else 1


def bottleneck_forward(x_nchw, params):
    """Forward pass of Bottleneck.  Params are in PyTorch layouts:
       w1:(width,Cin,1,1)  w2:(width,width,3,3)  w3:(Cout,width,1,1)
       g*/b*: (C, H, W)  (LayerNorm weight/bias)."""
    w1, w2, w3, g1, b1, g2, b2, g3, b3 = params
    N, Cin, H, W = x_nchw.shape
    Cw = w1.shape[0]
    Cout = w3.shape[0]
    assert Cout == Cin, "identity residual requires inplanes == planes*expansion"
    HW = H * W

    NB = _pick_nb(N, HW)          # samples folded into one grid step
    NC = N // NB                  # grid steps
    M = NB * HW                   # matmul M dim / lane dim

    x = x_nchw.astype(jnp.float32)
    # (NC, Cin, NB*HW); column m = nb*HW + h*W + w (lane-dense, flattened NCHW).
    x_in = x.reshape(NC, NB, Cin, HW).transpose(0, 2, 1, 3).reshape(NC, Cin, M)

    # Weights: PyTorch OIHW -> forms the kernel consumes directly.
    w1t = w1.reshape(Cw, Cin).astype(jnp.float32)                         # (Cw, Cin)
    w2row = jnp.transpose(w2, (0, 2, 3, 1)).reshape(Cw, 9 * Cw).astype(jnp.float32)
    w3t = w3.reshape(Cout, Cw).astype(jnp.float32)                        # (Cout, Cw)

    # LayerNorm affine params: (C, H, W) -> (C, NB*HW), tiled across samples.
    def tile_cm(p, c):
        return jnp.tile(p.reshape(c, HW).astype(jnp.float32), (1, NB))

    g1t, b1t = tile_cm(g1, Cw), tile_cm(b1, Cw)
    g2t, b2t = tile_cm(g2, Cw), tile_cm(b2, Cw)
    g3t, b3t = tile_cm(g3, Cout), tile_cm(b3, Cout)

    tap_mask, smask = _build_masks(H, W, NB)

    # Static lane-rotation amounts for the 9 taps (sign-adapted to pltpu.roll).
    sgn = _roll_sign()
    offs = [(k // 3 - 1) * W + (k % 3 - 1) for k in range(9)]
    shifts = [(sgn * off) % M for off in offs]

    inv_n1 = 1.0 / float(Cw * HW)     # LN1 / LN2 element count (per sample)
    inv_n3 = 1.0 / float(Cout * HW)   # LN3 element count (per sample)

    def kernel(x_ref, w1_ref, w2_ref, w3_ref,
               g1_ref, b1_ref, g2_ref, b2_ref, g3_ref, b3_ref,
               tm_ref, sm_ref, o_ref, patch_ref):
        # Hoisted per-sample masks (read once, reused by all three LayerNorms).
        masks = [sm_ref[nb] for nb in range(NB)]          # each (1, M)

        def layernorm(t, g, b, inv_n):
            # Fused single-pass per-sample LayerNorm over all (C, H, W)
            # elements of each sample: var = E[x^2] - mu^2.
            tt = t * t
            mu_row = jnp.zeros((1, M), jnp.float32)
            inv_row = jnp.zeros((1, M), jnp.float32)
            for nb in range(NB):
                mk = masks[nb]
                mu = jnp.sum(t * mk) * inv_n
                var = jnp.sum(tt * mk) * inv_n - mu * mu
                inv = lax.rsqrt(var + EPS)
                mu_row = mu_row + mk * mu
                inv_row = inv_row + mk * inv
            return (t - mu_row) * inv_row * g + b

        xT = x_ref[0]                                     # (Cin, M)

        # conv1 (1x1) -> LN -> ReLU
        o1 = jnp.dot(w1_ref[...], xT, preferred_element_type=jnp.float32)
        o1 = jnp.maximum(layernorm(o1, g1_ref[...], b1_ref[...], inv_n1), 0.0)

        # conv2 (3x3, stride 1, pad 1): gather the 9 shifted taps with XLU
        # lane rolls + boundary masks (exact zero padding -- wrapped lanes are
        # always masked out), then ONE im2col matmul with K = 9*Cw.
        for k in range(9):
            s = shifts[k]
            tap = o1 if s == 0 else pltpu.roll(o1, s, axis=1)
            patch_ref[pl.ds(k * Cw, Cw), :] = tap * tm_ref[k]
        o2 = jnp.dot(w2_ref[...], patch_ref[...],
                     preferred_element_type=jnp.float32)  # (Cw, M)
        o2 = jnp.maximum(layernorm(o2, g2_ref[...], b2_ref[...], inv_n1), 0.0)

        # conv3 (1x1) -> LN -> residual add (identity) -> ReLU
        o3 = jnp.dot(w3_ref[...], o2, preferred_element_type=jnp.float32)
        o3 = layernorm(o3, g3_ref[...], b3_ref[...], inv_n3)
        o_ref[0] = jnp.maximum(o3 + xT, 0.0)              # lane-dense store

    def const_spec(a):
        nd = a.ndim
        return pl.BlockSpec(a.shape, lambda i, _nd=nd: (0,) * _nd)

    out = pl.pallas_call(
        kernel,
        out_shape=jax.ShapeDtypeStruct((NC, Cout, M), jnp.float32),
        grid=(NC,),
        in_specs=[
            pl.BlockSpec((1, Cin, M), lambda i: (i, 0, 0)),
            const_spec(w1t), const_spec(w2row), const_spec(w3t),
            const_spec(g1t), const_spec(b1t),
            const_spec(g2t), const_spec(b2t),
            const_spec(g3t), const_spec(b3t),
            const_spec(tap_mask), const_spec(smask),
        ],
        out_specs=pl.BlockSpec((1, Cout, M), lambda i: (i, 0, 0)),
        scratch_shapes=[pltpu.VMEM((9 * Cw, M), jnp.float32)],
        compiler_params=pltpu.CompilerParams(
            dimension_semantics=("parallel",)),
    )(x_in, w1t, w2row, w3t, g1t, b1t, g2t, b2t, g3t, b3t, tap_mask, smask)

    # (NC, Cout, NB*HW) -> (N, Cout, H, W)
    out = out.reshape(NC, Cout, NB, H, W).transpose(0, 2, 1, 3, 4)
    return out.reshape(N, Cout, H, W)


def ref_forward(x, params):
    """Pure-JAX NCHW reference with the exact PyTorch-module math."""
    w1, w2, w3, g1, b1, g2, b2, g3, b3 = params

    def ln(t, g, b):
        mu = jnp.mean(t, axis=(1, 2, 3), keepdims=True)
        var = jnp.mean((t - mu) ** 2, axis=(1, 2, 3), keepdims=True)
        return (t - mu) * lax.rsqrt(var + EPS) * g[None] + b[None]

    o = jnp.einsum('oi,nihw->nohw', w1[:, :, 0, 0], x)
    o = jax.nn.relu(ln(o, g1, b1))
    o = lax.conv_general_dilated(o, w2, (1, 1), 'SAME',
                                 dimension_numbers=('NCHW', 'OIHW', 'NCHW'))
    o = jax.nn.relu(ln(o, g2, b2))
    o = jnp.einsum('oi,nihw->nohw', w3[:, :, 0, 0], o)
    o = ln(o, g3, b3)
    return jax.nn.relu(o + x)


if __name__ == "__main__":
    # Module config: Bottleneck(inplanes=16, planes=4, img_size=8),
    # stride=1, groups=1, base_width=64, downsample=None
    #   -> width = 4, out channels = planes * expansion = 16.
    N, inplanes, planes, img = 2, 16, 4, 8
    width = planes                      # int(planes * 64/64) * 1
    Cout = planes * 4                   # expansion = 4
    H = W = img

    key = jax.random.PRNGKey(0)
    ks = jax.random.split(key, 10)
    x = jax.random.normal(ks[0], (N, inplanes, H, W), jnp.float32)

    # Parameters in true PyTorch layouts (conv OIHW, LayerNorm (C, H, W)).
    w1 = 0.2 * jax.random.normal(ks[1], (width, inplanes, 1, 1), jnp.float32)
    w2 = 0.2 * jax.random.normal(ks[2], (width, width, 3, 3), jnp.float32)
    w3 = 0.2 * jax.random.normal(ks[3], (Cout, width, 1, 1), jnp.float32)
    g1 = 1.0 + 0.1 * jax.random.normal(ks[4], (width, H, W), jnp.float32)
    b1 = 0.1 * jax.random.normal(ks[5], (width, H, W), jnp.float32)
    g2 = 1.0 + 0.1 * jax.random.normal(ks[6], (width, H, W), jnp.float32)
    b2 = 0.1 * jax.random.normal(ks[7], (width, H, W), jnp.float32)
    g3 = 1.0 + 0.1 * jax.random.normal(ks[8], (Cout, H, W), jnp.float32)
    b3 = 0.1 * jax.random.normal(ks[9], (Cout, H, W), jnp.float32)
    params = (w1, w2, w3, g1, b1, g2, b2, g3, b3)

    out = jax.block_until_ready(bottleneck_forward(x, params))
    assert out.shape == (N, Cout, H, W)

    ref = ref_forward(x, params)
    err = float(jnp.max(jnp.abs(out - ref)))
    assert jnp.allclose(out, ref, atol=2e-3, rtol=2e-3), \
        f"mismatch vs reference, max abs err = {err}"

    print("KERNEL_OK")
</pallas_src>

<mosaic_0001>
module attributes {stable_mosaic.version = 11 : i64} {
  func.func @probe(%arg0: memref<8x128xf32, #tpu.memory_space<vmem>>, %arg1: memref<8x128xf32, #tpu.memory_space<vmem>>) attributes {dimension_semantics = [], scalar_prefetch = 0 : i64, scratch_operands = 0 : i64, tpu.core_type = #tpu.core_type<tc>} {
    %c0 = arith.constant 0 : index
    %c0_0 = arith.constant 0 : index
    %0 = vector.load %arg0[%c0, %c0_0] : memref<8x128xf32, #tpu.memory_space<vmem>>, vector<8x128xf32>
    %c1_i32 = arith.constant 1 : i32
    %1 = tpu.dynamic_rotate %0 by %c1_i32 dim 1 : vector<8x128xf32>, i32 -> vector<8x128xf32>
    %c0_1 = arith.constant 0 : index
    %c0_2 = arith.constant 0 : index
    %2 = vector.load %arg1[%c0_1, %c0_2] : memref<8x128xf32, #tpu.memory_space<vmem>>, vector<8x128xf32>
    tpu.vector_store %arg1[%c0_1, %c0_2], %1 {strides = array<i32>} : memref<8x128xf32, #tpu.memory_space<vmem>>, vector<8x128xf32>,
    return
  }
}

</mosaic_0001>

<llo_original>
// kernel: tpu_custom_call.1
$region0: #{tpu_custom_call.1}
  #allocation0 [shape = 'u32[]', space=smem, size = 0x4, offset = 0x4, fixed_abs, tag = 'smem constant byte address 0x4 - core index']
  #allocation1 [shape = 'u32[144,128]{1,0:T(1,128)}', space=vmem, size = 0x12000, scoped, tag = 'internal scratch']
  %s0 = inlined_call_operand.hbm [shape: f32[8,128], index: 0, kind: input, shape index: {}]
  %s1 = inlined_call_operand.hbm [shape: f32[8,128], index: 1, kind: output, shape index: {}]
  %s2 = sld [smem:[#allocation0]]
  $region18: #{tpu_custom_call.1} parent=0
    _
  %s4 = ssub.s32 1, %s2
  %s5 = scalar_select 0, %s4, %s2
  $region1: #{tpu_custom_call.1} parent=0
    #allocation2 [shape = 'u8[4096]{0}', space=vmem, size = 0x1000, scoped, tag = 'input window, operand 0, single buffered']
    #allocation3 [shape = 's32[1]{0}', space=sflag, size = 0x4, scoped, tag = 'scoped memory for tpu_custom_call.1']
    #allocation4 [shape = 's32[1]{0}', space=sflag, size = 0x4, scoped, tag = 'scoped memory for tpu_custom_call.1']
    #allocation5 [shape = 'u8[4096]{0}', space=vmem, size = 0x1000, scoped, tag = 'output window, operand 0, single buffered']
    %6 = vsyncpa [#allocation3], 0
    %7 = vsyncpa [#allocation4], 0
    // Predicated region
    $region2: #{tpu_custom_call.1} parent=1 // pred_check
      _
    $region3: #{tpu_custom_call.1} parent=1 // pred_check_branch
      %9 = sbr.rel (0) target = $region5
    $region4: #{tpu_custom_call.1} parent=1 // pred_region
      %s11 = ssub.s32 128, 128
      %12 = vsyncadd [#allocation3], %s11
      %s14 = sshll.u32 [#allocation2], 4
      %s15 = int_to_ptr.vmem [resolvable:$true] %s14
      %17 = dma.hbm_to_vmem [thread:$0]  %s0, 128, %s15, [#allocation3]
    $region5: #{tpu_custom_call.1} parent=1 // pred_fallthru
      _
    // Predicated region
    $region6: #{tpu_custom_call.1} parent=1 // pred_check
      _
    $region7: #{tpu_custom_call.1} parent=1 // pred_check_branch
      %19 = sbr.rel (0) target = $region9
    $region8: #{tpu_custom_call.1} parent=1 // pred_region
      %20 = dma.done [#allocation3], 128
    $region9: #{tpu_custom_call.1} parent=1 // pred_fallthru
      _
    %v21 = vld [vmem:[#allocation2] sm:$0xff]
    %22 = vrot.lane.b32.xlu0 %v21, 1
    %v23 = vpop.permute.xlu0 %22
    %24 = vst [vmem:[#allocation5] sm:$0xff] %v23
    // Predicated region
    $region10: #{tpu_custom_call.1} parent=1 // pred_check
      _
    $region11: #{tpu_custom_call.1} parent=1 // pred_check_branch
      %26 = sbr.rel (0) target = $region13
    $region12: #{tpu_custom_call.1} parent=1 // pred_region
      %s28 = ssub.s32 128, 128
      %29 = vsyncadd [#allocation4], %s28
      %s31 = sshll.u32 [#allocation5], 4
      %s32 = int_to_ptr.vmem [resolvable:$true] %s31
      %34 = dma.vmem_to_hbm [thread:$0]  %s32, 128, %s1, [#allocation4]
    $region13: #{tpu_custom_call.1} parent=1 // pred_fallthru
      _
    // Predicated region
    $region14: #{tpu_custom_call.1} parent=1 // pred_check
      _
    $region15: #{tpu_custom_call.1} parent=1 // pred_check_branch
      %36 = sbr.rel (0) target = $region17
    $region16: #{tpu_custom_call.1} parent=1 // pred_region
      %37 = dma.done [#allocation4], 128
    $region17: #{tpu_custom_call.1} parent=1 // pred_fallthru
      _
    %38 = vsyncpa [#allocation3], 1
    %39 = vsyncpa [#allocation4], 1

</llo_original>
